<compile_context>
chip_gen: v6e
topology: v6e:2x2x1
jax: 0.10.0
libtpu: 0.0.40
codegen_flags: <defaults>
</compile_context>

<pallas_src>
import functools

import jax
import jax.numpy as jnp
from jax.experimental import pallas as pl
from jax.experimental.pallas import tpu as pltpu

_EPS = 1e-5


def _ddt_kernel(x_ref, band1_ref, band2_ref, pool_ref, gb_ref, o_ref, *, H, inv_count):
    """Lane-dense operands:
       x_ref    : (H, N*W*C)        packed input (lane axis = 128 at test size)
       band*_ref: (3*N*W*C, N*W*C)  stacked banded conv weights (row taps -1,0,+1)
       pool_ref : (N*W*C, N*W*C)    channel pooling matrix (1 where lane % C matches)
       gb_ref   : (4, N*W*C)        [gamma1; beta1; gamma2; beta2], tiled across N*W
    """
    x = x_ref[...]
    pool = pool_ref[...]

    # Image-edge row masks (h == 0 / h == H-1) for the zero-padded row taps.
    row = jax.lax.broadcasted_iota(jnp.int32, (H, 1), 0)
    top = row == 0
    bot = row == H - 1

    def conv_bn(src, band_ref, gamma, beta):
        # 3x3 conv as ONE MXU matmul with K = 3*N*W*C:
        #  * +/-1 row shifts (with edge zeroing) on the XLU/VPU via roll + mask,
        #  * width taps and width zero-padding baked into the banded weights.
        up = jnp.where(top, 0.0, pltpu.roll(src, 1, axis=0))      # src[h-1], 0 at h==0
        dn = jnp.where(bot, 0.0, pltpu.roll(src, H - 1, axis=0))  # src[h+1], 0 at h==H-1
        lhs = jnp.concatenate([up, src, dn], axis=1)              # (H, 3*N*W*C)
        y = jnp.dot(lhs, band_ref[...], preferred_element_type=jnp.float32)

        # Single-pass batch-norm statistics (training mode, biased variance).
        # TODO(synk): E[y^2]-mean^2 is cancellation-prone at much larger sizes;
        # it is well within the 2e-4 tolerance at this problem size.
        s1 = jnp.sum(y, axis=0, keepdims=True)                    # (1, NWC)
        s2 = jnp.sum(y * y, axis=0, keepdims=True)                # (1, NWC)
        ss = jnp.concatenate([s1, s2], axis=0)                    # (2, NWC) -> 1 pooling matmul
        ms = jnp.dot(ss, pool, preferred_element_type=jnp.float32) * inv_count
        mean = ms[0:1, :]
        var = ms[1:2, :] - mean * mean
        scale = gamma * jax.lax.rsqrt(var + _EPS)                 # (1, NWC)
        shift = beta - mean * scale                               # (1, NWC)
        return y * scale + shift                                  # fused normalize + affine

    g1 = gb_ref[0:1, :]
    b1 = gb_ref[1:2, :]
    g2 = gb_ref[2:3, :]
    b2 = gb_ref[3:4, :]

    h = jnp.maximum(conv_bn(x, band1_ref, g1, b1), 0.0)   # Conv1 -> BN1 -> ReLU
    t = jax.nn.sigmoid(conv_bn(h, band2_ref, g2, b2))     # Conv2 -> BN2 -> Sigmoid
    o_ref[...] = (x * t).astype(o_ref.dtype)              # gate the original input


def _band_matrices(w_oihw, W, N):
    """(Cout,Cin,3,3) PyTorch conv weight -> (3*N*W*Cin, N*W*Cout) stacked banded
    matrices: width padding=1 baked in, block-diagonal over the batch index n,
    row-tap blocks stacked along rows in order dy = -1, 0, +1 (matching the
    [up, src, dn] lane concatenation in the kernel)."""
    cout, cin, kh, kw = w_oihw.shape
    wk = jnp.transpose(w_oihw.astype(jnp.float32), (2, 3, 1, 0))   # (dy, dx, ci, co)
    dx = jnp.arange(kw)[:, None, None]
    win = jnp.arange(W)[None, :, None]
    wout = jnp.arange(W)[None, None, :]
    sel = (win == wout + dx - 1).astype(jnp.float32)               # (dx, win, wout)
    band = jnp.einsum('xio,yxcf->yicof', sel, wk)                  # (dy, win, ci, wout, co)
    band = band.reshape(kh, W * cin, W * cout)
    eye_n = jnp.eye(N, dtype=jnp.float32)
    band = jnp.einsum('nm,yij->ynimj', eye_n, band)                # block-diag over n
    return band.reshape(kh * N * W * cin, N * W * cout)


def _channel_pool_matrix(nwc, C):
    idx = jnp.arange(nwc)
    return (idx[:, None] % C == idx[None, :] % C).astype(jnp.float32)


def dynamic_data_transformation(x_nchw, w1, w2, g1, b1, g2, b2):
    """x_nchw: (N,C,H,W) f32; w1/w2: (C,C,3,3) PyTorch conv weights;
    g*/b*: (C,) BatchNorm affine params.  Returns (N,C,H,W)."""
    N, C, H, W = x_nchw.shape
    NWC = N * W * C

    # Layout plumbing (hoisted out of the kernel): NCHW -> lane-dense (H, N*W*C).
    # Folding N into lanes makes the lane width a multiple of 128 at this size
    # -> unmasked vector stores and full vreg / MXU lane utilization.
    x2d = jnp.transpose(x_nchw, (2, 0, 3, 1)).astype(jnp.float32).reshape(H, NWC)
    band1 = _band_matrices(w1, W, N)
    band2 = _band_matrices(w2, W, N)
    pool = _channel_pool_matrix(NWC, C)
    gb = jnp.stack([jnp.tile(g1.astype(jnp.float32), N * W),
                    jnp.tile(b1.astype(jnp.float32), N * W),
                    jnp.tile(g2.astype(jnp.float32), N * W),
                    jnp.tile(b2.astype(jnp.float32), N * W)], axis=0)   # (4, NWC)

    kernel = functools.partial(_ddt_kernel, H=H, inv_count=1.0 / float(N * H * W))

    # Advisory cost estimate so XLA schedules neighbours around the call.
    flops = 2 * (2 * H * NWC * 3 * NWC) + 2 * (2 * 2 * NWC * NWC) + 24 * H * NWC
    transcendentals = H * NWC + 2 * NWC
    bytes_accessed = 4 * (2 * H * NWC + 2 * 3 * NWC * NWC + NWC * NWC + 4 * NWC)

    # Single block: the whole problem (< 0.5 MiB of operands) fits VMEM on any
    # generation (incl. v7x's 64 MiB); extra grid steps / tiling would only add
    # fixed overhead at this size.
    out2d = pl.pallas_call(
        kernel,
        out_shape=jax.ShapeDtypeStruct((H, NWC), jnp.float32),
        grid=(1,),
        in_specs=[
            pl.BlockSpec((H, NWC), lambda i: (0, 0)),
            pl.BlockSpec((3 * NWC, NWC), lambda i: (0, 0)),
            pl.BlockSpec((3 * NWC, NWC), lambda i: (0, 0)),
            pl.BlockSpec((NWC, NWC), lambda i: (0, 0)),
            pl.BlockSpec((4, NWC), lambda i: (0, 0)),
        ],
        out_specs=pl.BlockSpec((H, NWC), lambda i: (0, 0)),
        compiler_params=pltpu.CompilerParams(dimension_semantics=("arbitrary",)),
        cost_estimate=pl.CostEstimate(flops=flops,
                                      transcendentals=transcendentals,
                                      bytes_accessed=bytes_accessed),
    )(x2d, band1, band2, pool, gb)

    # Unpack back to NCHW.
    return jnp.transpose(out2d.reshape(H, N, W, C), (1, 3, 0, 2))


def _reference(x, w1, w2, g1, b1, g2, b2):
    """Pure-JAX NCHW reference mirroring the PyTorch module (training-mode BN)."""
    def conv(h, w):
        return jax.lax.conv_general_dilated(
            h, w, window_strides=(1, 1), padding=((1, 1), (1, 1)),
            dimension_numbers=("NCHW", "OIHW", "NCHW"))

    def bn(h, g, b):
        m = jnp.mean(h, axis=(0, 2, 3), keepdims=True)
        v = jnp.mean((h - m) ** 2, axis=(0, 2, 3), keepdims=True)
        return (h - m) * jax.lax.rsqrt(v + _EPS) * g.reshape(1, -1, 1, 1) + b.reshape(1, -1, 1, 1)

    h = jax.nn.relu(bn(conv(x, w1), g1, b1))
    t = jax.nn.sigmoid(bn(conv(h, w2), g2, b2))
    return x * t


if __name__ == "__main__":
    N, C, H, W = 2, 4, 16, 16
    key = jax.random.PRNGKey(0)
    kx, k1, k2, k3, k4, k5, k6 = jax.random.split(key, 7)

    x = jax.random.normal(kx, (N, C, H, W), dtype=jnp.float32)
    fan_in = C * 9
    w1 = jax.random.normal(k1, (C, C, 3, 3), dtype=jnp.float32) * (2.0 / fan_in) ** 0.5
    w2 = jax.random.normal(k2, (C, C, 3, 3), dtype=jnp.float32) * (2.0 / fan_in) ** 0.5
    # BatchNorm affine params (non-trivial to exercise the fused scale/shift path).
    g1 = 1.0 + 0.1 * jax.random.normal(k3, (C,), dtype=jnp.float32)
    b1 = 0.1 * jax.random.normal(k4, (C,), dtype=jnp.float32)
    g2 = 1.0 + 0.1 * jax.random.normal(k5, (C,), dtype=jnp.float32)
    b2 = 0.1 * jax.random.normal(k6, (C,), dtype=jnp.float32)

    out = jax.block_until_ready(dynamic_data_transformation(x, w1, w2, g1, b1, g2, b2))
    ref = jax.block_until_ready(_reference(x, w1, w2, g1, b1, g2, b2))

    assert out.shape == (N, C, H, W)
    max_err = float(jnp.max(jnp.abs(out - ref)))
    assert jnp.allclose(out, ref, rtol=2e-4, atol=2e-4), max_err
    print("KERNEL_OK")
</pallas_src>

<mosaic_0001>
module attributes {stable_mosaic.version = 11 : i64} {
  func.func @_ddt_kernel(%arg0: i32, %arg1: memref<16x128xf32, #tpu.memory_space<vmem>>, %arg2: memref<384x128xf32, #tpu.memory_space<vmem>>, %arg3: memref<384x128xf32, #tpu.memory_space<vmem>>, %arg4: memref<128x128xf32, #tpu.memory_space<vmem>>, %arg5: memref<4x128xf32, #tpu.memory_space<vmem>>, %arg6: memref<16x128xf32, #tpu.memory_space<vmem>>) attributes {dimension_semantics = [#tpu.dimension_semantics<arbitrary>], iteration_bounds = array<i64: 1>, scalar_prefetch = 0 : i64, scratch_operands = 0 : i64, tpu.core_type = #tpu.core_type<tc>, window_params = [{pipeline_mode = #tpu.pipeline_mode<synchronous>, transform_indices = @transform_0, window_bounds = array<i64: 16, 128>}, {pipeline_mode = #tpu.pipeline_mode<synchronous>, transform_indices = @transform_1, window_bounds = array<i64: 384, 128>}, {pipeline_mode = #tpu.pipeline_mode<synchronous>, transform_indices = @transform_2, window_bounds = array<i64: 384, 128>}, {pipeline_mode = #tpu.pipeline_mode<synchronous>, transform_indices = @transform_3, window_bounds = array<i64: 128, 128>}, {pipeline_mode = #tpu.pipeline_mode<synchronous>, transform_indices = @transform_4, window_bounds = array<i64: 4, 128>}, {pipeline_mode = #tpu.pipeline_mode<synchronous>, transform_indices = @transform_5, window_bounds = array<i64: 16, 128>}]} {
    %c0 = arith.constant 0 : index
    %c0_0 = arith.constant 0 : index
    %0 = vector.load %arg1[%c0, %c0_0] : memref<16x128xf32, #tpu.memory_space<vmem>>, vector<16x128xf32>
    %c0_1 = arith.constant 0 : index
    %c0_2 = arith.constant 0 : index
    %1 = vector.load %arg4[%c0_1, %c0_2] : memref<128x128xf32, #tpu.memory_space<vmem>>, vector<128x128xf32>
    %2 = tpu.iota {dimensions = array<i32: 0>} : vector<16x1xi32>
    %c0_i32 = arith.constant 0 : i32
    %3 = vector.broadcast %c0_i32 : i32 to vector<16x1xi32>
    %4 = arith.cmpi eq, %2, %3 : vector<16x1xi32>
    %c15_i32 = arith.constant 15 : i32
    %5 = vector.broadcast %c15_i32 : i32 to vector<16x1xi32>
    %6 = arith.cmpi eq, %2, %5 : vector<16x1xi32>
    %c0_3 = arith.constant 0 : index
    %c0_4 = arith.constant 0 : index
    %7 = vector.load %arg5[%c0_3, %c0_4] : memref<4x128xf32, #tpu.memory_space<vmem>>, vector<1x128xf32>
    %c1 = arith.constant 1 : index
    %c0_5 = arith.constant 0 : index
    %8 = vector.load %arg5[%c1, %c0_5] : memref<4x128xf32, #tpu.memory_space<vmem>>, vector<1x128xf32>
    %c2 = arith.constant 2 : index
    %c0_6 = arith.constant 0 : index
    %9 = vector.load %arg5[%c2, %c0_6] : memref<4x128xf32, #tpu.memory_space<vmem>>, vector<1x128xf32>
    %c3 = arith.constant 3 : index
    %c0_7 = arith.constant 0 : index
    %10 = vector.load %arg5[%c3, %c0_7] : memref<4x128xf32, #tpu.memory_space<vmem>>, vector<1x128xf32>
    %c1_i32 = arith.constant 1 : i32
    %11 = tpu.dynamic_rotate %0 by %c1_i32 dim 0 : vector<16x128xf32>, i32 -> vector<16x128xf32>
    %cst = arith.constant 0.000000e+00 : f32
    %12 = vector.shape_cast %4 : vector<16x1xi1> to vector<16x1xi1>
    %13 = vector.broadcast %12 : vector<16x1xi1> to vector<16x128xi1>
    %14 = vector.broadcast %cst : f32 to vector<16x128xf32>
    %15 = arith.select %13, %14, %11 : vector<16x128xi1>, vector<16x128xf32>
    %c15_i32_8 = arith.constant 15 : i32
    %16 = tpu.dynamic_rotate %0 by %c15_i32_8 dim 0 : vector<16x128xf32>, i32 -> vector<16x128xf32>
    %cst_9 = arith.constant 0.000000e+00 : f32
    %17 = vector.shape_cast %6 : vector<16x1xi1> to vector<16x1xi1>
    %18 = vector.broadcast %17 : vector<16x1xi1> to vector<16x128xi1>
    %19 = vector.broadcast %cst_9 : f32 to vector<16x128xf32>
    %20 = arith.select %18, %19, %16 : vector<16x128xi1>, vector<16x128xf32>
    %21 = tpu.concatenate %15, %0, %20 in 1 : vector<16x128xf32>, vector<16x128xf32>, vector<16x128xf32> -> vector<16x384xf32>
    %c0_10 = arith.constant 0 : index
    %c0_11 = arith.constant 0 : index
    %22 = vector.load %arg2[%c0_10, %c0_11] : memref<384x128xf32, #tpu.memory_space<vmem>>, vector<384x128xf32>
    %cst_12 = arith.constant dense<0.000000e+00> : vector<16x128xf32>
    %23 = tpu.matmul %21, %22, %cst_12 {dimension_numbers = #tpu.dot_dimension_numbers<[1], [0], [0], [1], [0, 0, 1, 1], [], []>} : vector<16x384xf32>, vector<384x128xf32>, vector<16x128xf32> -> vector<16x128xf32>
    %cst_13 = arith.constant dense<0.000000e+00> : vector<128xf32>
    %24 = vector.multi_reduction <add>, %23, %cst_13 [0] : vector<16x128xf32> to vector<128xf32>
    %25 = vector.shape_cast %24 : vector<128xf32> to vector<1x128xf32>
    %26 = arith.mulf %23, %23 : vector<16x128xf32>
    %cst_14 = arith.constant dense<0.000000e+00> : vector<128xf32>
    %27 = vector.multi_reduction <add>, %26, %cst_14 [0] : vector<16x128xf32> to vector<128xf32>
    %28 = vector.shape_cast %27 : vector<128xf32> to vector<1x128xf32>
    %29 = tpu.concatenate %25, %28 in 0 : vector<1x128xf32>, vector<1x128xf32> -> vector<2x128xf32>
    %cst_15 = arith.constant dense<0.000000e+00> : vector<2x128xf32>
    %30 = tpu.matmul %29, %1, %cst_15 {dimension_numbers = #tpu.dot_dimension_numbers<[1], [0], [0], [1], [0, 0, 1, 1], [], []>} : vector<2x128xf32>, vector<128x128xf32>, vector<2x128xf32> -> vector<2x128xf32>
    %cst_16 = arith.constant 0.001953125 : f32
    %31 = vector.broadcast %cst_16 : f32 to vector<2x128xf32>
    %32 = arith.mulf %30, %31 : vector<2x128xf32>
    %33 = vector.extract_strided_slice %32 {offsets = [0, 0], sizes = [1, 128], strides = [1, 1]} : vector<2x128xf32> to vector<1x128xf32>
    %34 = vector.extract_strided_slice %32 {offsets = [1, 0], sizes = [1, 128], strides = [1, 1]} : vector<2x128xf32> to vector<1x128xf32>
    %35 = arith.mulf %33, %33 : vector<1x128xf32>
    %36 = arith.subf %34, %35 : vector<1x128xf32>
    %cst_17 = arith.constant 9.99999974E-6 : f32
    %37 = vector.broadcast %cst_17 : f32 to vector<1x128xf32>
    %38 = arith.addf %36, %37 : vector<1x128xf32>
    %39 = math.rsqrt %38 : vector<1x128xf32>
    %40 = arith.mulf %7, %39 : vector<1x128xf32>
    %41 = arith.mulf %33, %40 : vector<1x128xf32>
    %42 = arith.subf %8, %41 : vector<1x128xf32>
    %43 = vector.broadcast %40 : vector<1x128xf32> to vector<16x128xf32>
    %44 = arith.mulf %23, %43 : vector<16x128xf32>
    %45 = vector.broadcast %42 : vector<1x128xf32> to vector<16x128xf32>
    %46 = arith.addf %44, %45 : vector<16x128xf32>
    %cst_18 = arith.constant 0.000000e+00 : f32
    %47 = vector.broadcast %cst_18 : f32 to vector<16x128xf32>
    %48 = arith.maximumf %46, %47 : vector<16x128xf32>
    %c1_i32_19 = arith.constant 1 : i32
    %49 = tpu.dynamic_rotate %48 by %c1_i32_19 dim 0 : vector<16x128xf32>, i32 -> vector<16x128xf32>
    %cst_20 = arith.constant 0.000000e+00 : f32
    %50 = vector.shape_cast %4 : vector<16x1xi1> to vector<16x1xi1>
    %51 = vector.broadcast %50 : vector<16x1xi1> to vector<16x128xi1>
    %52 = vector.broadcast %cst_20 : f32 to vector<16x128xf32>
    %53 = arith.select %51, %52, %49 : vector<16x128xi1>, vector<16x128xf32>
    %c15_i32_21 = arith.constant 15 : i32
    %54 = tpu.dynamic_rotate %48 by %c15_i32_21 dim 0 : vector<16x128xf32>, i32 -> vector<16x128xf32>
    %cst_22 = arith.constant 0.000000e+00 : f32
    %55 = vector.shape_cast %6 : vector<16x1xi1> to vector<16x1xi1>
    %56 = vector.broadcast %55 : vector<16x1xi1> to vector<16x128xi1>
    %57 = vector.broadcast %cst_22 : f32 to vector<16x128xf32>
    %58 = arith.select %56, %57, %54 : vector<16x128xi1>, vector<16x128xf32>
    %59 = tpu.concatenate %53, %48, %58 in 1 : vector<16x128xf32>, vector<16x128xf32>, vector<16x128xf32> -> vector<16x384xf32>
    %c0_23 = arith.constant 0 : index
    %c0_24 = arith.constant 0 : index
    %60 = vector.load %arg3[%c0_23, %c0_24] : memref<384x128xf32, #tpu.memory_space<vmem>>, vector<384x128xf32>
    %cst_25 = arith.constant dense<0.000000e+00> : vector<16x128xf32>
    %61 = tpu.matmul %59, %60, %cst_25 {dimension_numbers = #tpu.dot_dimension_numbers<[1], [0], [0], [1], [0, 0, 1, 1], [], []>} : vector<16x384xf32>, vector<384x128xf32>, vector<16x128xf32> -> vector<16x128xf32>
    %cst_26 = arith.constant dense<0.000000e+00> : vector<128xf32>
    %62 = vector.multi_reduction <add>, %61, %cst_26 [0] : vector<16x128xf32> to vector<128xf32>
    %63 = vector.shape_cast %62 : vector<128xf32> to vector<1x128xf32>
    %64 = arith.mulf %61, %61 : vector<16x128xf32>
    %cst_27 = arith.constant dense<0.000000e+00> : vector<128xf32>
    %65 = vector.multi_reduction <add>, %64, %cst_27 [0] : vector<16x128xf32> to vector<128xf32>
    %66 = vector.shape_cast %65 : vector<128xf32> to vector<1x128xf32>
    %67 = tpu.concatenate %63, %66 in 0 : vector<1x128xf32>, vector<1x128xf32> -> vector<2x128xf32>
    %cst_28 = arith.constant dense<0.000000e+00> : vector<2x128xf32>
    %68 = tpu.matmul %67, %1, %cst_28 {dimension_numbers = #tpu.dot_dimension_numbers<[1], [0], [0], [1], [0, 0, 1, 1], [], []>} : vector<2x128xf32>, vector<128x128xf32>, vector<2x128xf32> -> vector<2x128xf32>
    %cst_29 = arith.constant 0.001953125 : f32
    %69 = vector.broadcast %cst_29 : f32 to vector<2x128xf32>
    %70 = arith.mulf %68, %69 : vector<2x128xf32>
    %71 = vector.extract_strided_slice %70 {offsets = [0, 0], sizes = [1, 128], strides = [1, 1]} : vector<2x128xf32> to vector<1x128xf32>
    %72 = vector.extract_strided_slice %70 {offsets = [1, 0], sizes = [1, 128], strides = [1, 1]} : vector<2x128xf32> to vector<1x128xf32>
    %73 = arith.mulf %71, %71 : vector<1x128xf32>
    %74 = arith.subf %72, %73 : vector<1x128xf32>
    %cst_30 = arith.constant 9.99999974E-6 : f32
    %75 = vector.broadcast %cst_30 : f32 to vector<1x128xf32>
    %76 = arith.addf %74, %75 : vector<1x128xf32>
    %77 = math.rsqrt %76 : vector<1x128xf32>
    %78 = arith.mulf %9, %77 : vector<1x128xf32>
    %79 = arith.mulf %71, %78 : vector<1x128xf32>
    %80 = arith.subf %10, %79 : vector<1x128xf32>
    %81 = vector.broadcast %78 : vector<1x128xf32> to vector<16x128xf32>
    %82 = arith.mulf %61, %81 : vector<16x128xf32>
    %83 = vector.broadcast %80 : vector<1x128xf32> to vector<16x128xf32>
    %84 = arith.addf %82, %83 : vector<16x128xf32>
    %85 = arith.negf %84 : vector<16x128xf32>
    %86 = math.exp %85 : vector<16x128xf32>
    %cst_31 = arith.constant 1.000000e+00 : f32
    %87 = vector.broadcast %cst_31 : f32 to vector<16x128xf32>
    %88 = arith.addf %87, %86 : vector<16x128xf32>
    %89 = arith.divf %87, %88 : vector<16x128xf32>
    %90 = arith.mulf %0, %89 : vector<16x128xf32>
    %c0_32 = arith.constant 0 : index
    %c0_33 = arith.constant 0 : index
    %91 = vector.load %arg6[%c0_32, %c0_33] : memref<16x128xf32, #tpu.memory_space<vmem>>, vector<16x128xf32>
    tpu.vector_store %arg6[%c0_32, %c0_33], %90 {strides = array<i32>} : memref<16x128xf32, #tpu.memory_space<vmem>>, vector<16x128xf32>,
    return
  }
  func.func @transform_0(%arg0: i32) -> (i32, i32) {
    %c0_i32 = arith.constant 0 : i32
    %c0_i32_0 = arith.constant 0 : i32
    %c0_i32_1 = arith.constant 0 : i32
    return %c0_i32, %c0_i32_0 : i32, i32
  }
  func.func @transform_1(%arg0: i32) -> (i32, i32) {
    %c0_i32 = arith.constant 0 : i32
    %c0_i32_0 = arith.constant 0 : i32
    %c0_i32_1 = arith.constant 0 : i32
    return %c0_i32, %c0_i32_0 : i32, i32
  }
  func.func @transform_2(%arg0: i32) -> (i32, i32) {
    %c0_i32 = arith.constant 0 : i32
    %c0_i32_0 = arith.constant 0 : i32
    %c0_i32_1 = arith.constant 0 : i32
    return %c0_i32, %c0_i32_0 : i32, i32
  }
  func.func @transform_3(%arg0: i32) -> (i32, i32) {
    %c0_i32 = arith.constant 0 : i32
    %c0_i32_0 = arith.constant 0 : i32
    %c0_i32_1 = arith.constant 0 : i32
    return %c0_i32, %c0_i32_0 : i32, i32
  }
  func.func @transform_4(%arg0: i32) -> (i32, i32) {
    %c0_i32 = arith.constant 0 : i32
    %c0_i32_0 = arith.constant 0 : i32
    %c0_i32_1 = arith.constant 0 : i32
    return %c0_i32, %c0_i32_0 : i32, i32
  }
  func.func @transform_5(%arg0: i32) -> (i32, i32) {
    %c0_i32 = arith.constant 0 : i32
    %c0_i32_0 = arith.constant 0 : i32
    %c0_i32_1 = arith.constant 0 : i32
    return %c0_i32, %c0_i32_0 : i32, i32
  }
}

</mosaic_0001>

<llo_original>
// kernel: tpu_custom_call.1
$region0: #{tpu_custom_call.1}
  #allocation0 [shape = 'u32[]', space=smem, size = 0x4, offset = 0x4, fixed_abs, tag = 'smem constant byte address 0x4 - core index']
  #allocation1 [shape = 'u32[144,128]{1,0:T(1,128)}', space=vmem, size = 0x12000, scoped, tag = 'internal scratch']
  %s0 = inlined_call_operand.hbm [shape: f32[16,128], index: 0, kind: input, shape index: {}]
  %s1 = inlined_call_operand.hbm [shape: f32[384,128], index: 1, kind: input, shape index: {}]
  %s2 = inlined_call_operand.hbm [shape: f32[384,128], index: 2, kind: input, shape index: {}]
  %s3 = inlined_call_operand.hbm [shape: f32[128,128], index: 3, kind: input, shape index: {}]
  %s4 = inlined_call_operand.vmem [shape: f32[4,128], index: 4, kind: input, shape index: {}]
  %s5 = inlined_call_operand.hbm [shape: f32[16,128], index: 5, kind: output, shape index: {}]
  %s6 = sld [smem:[#allocation0]]
  $region46: #{tpu_custom_call.1} parent=0
    _
  %s8 = ssub.s32 1, %s6
  %s9 = scalar_select 0, %s8, %s6
  $region1: #{tpu_custom_call.1} parent=0
    #allocation2 [shape = 'u8[8192]{0}', space=vmem, size = 0x2000, scoped, tag = 'input window, operand 0, single buffered']
    #allocation3 [shape = 's32[1]{0}', space=sflag, size = 0x4, scoped, tag = 'scoped memory for tpu_custom_call.1']
    #allocation4 [shape = 's32[1]{0}', space=sflag, size = 0x4, scoped, tag = 'scoped memory for tpu_custom_call.1']
    #allocation5 [shape = 'u8[196608]{0}', space=vmem, size = 0x30000, scoped, tag = 'input window, operand 1, single buffered']
    #allocation6 [shape = 's32[1]{0}', space=sflag, size = 0x4, scoped, tag = 'scoped memory for tpu_custom_call.1']
    #allocation7 [shape = 'u8[196608]{0}', space=vmem, size = 0x30000, scoped, tag = 'input window, operand 2, single buffered']
    #allocation8 [shape = 'u8[65536]{0}', space=vmem, size = 0x10000, scoped, tag = 'input window, operand 3, single buffered']
    #allocation9 [shape = 's32[1]{0}', space=sflag, size = 0x4, scoped, tag = 'scoped memory for tpu_custom_call.1']
    #allocation10 [shape = 'u8[8192]{0}', space=vmem, size = 0x2000, scoped, tag = 'output window, operand 0, single buffered']
    %10 = vsyncpa [#allocation3], 0
    %11 = vsyncpa [#allocation6], 0
    %12 = vsyncpa [#allocation9], 0
    %13 = vsyncpa [#allocation4], 0
    // Predicated region
    $region2: #{tpu_custom_call.1} parent=1 // pred_check
      _
    $region3: #{tpu_custom_call.1} parent=1 // pred_check_branch
      %15 = sbr.rel (0) target = $region5
    $region4: #{tpu_custom_call.1} parent=1 // pred_region
      %s17 = ssub.s32 256, 256
      %18 = vsyncadd [#allocation3], %s17
      %s19 = sshll.u32 [#allocation2], 4
      %s20 = int_to_ptr.vmem [resolvable:$true] %s19
      %25 = dma.hbm_to_vmem [thread:$0]  %s0, 256, %s20, [#allocation3], 128, 128, 8
    $region5: #{tpu_custom_call.1} parent=1 // pred_fallthru
      _
    // Predicated region
    $region6: #{tpu_custom_call.1} parent=1 // pred_check
      _
    $region7: #{tpu_custom_call.1} parent=1 // pred_check_branch
      %27 = sbr.rel (0) target = $region9
    $region8: #{tpu_custom_call.1} parent=1 // pred_region
      %s29 = ssub.s32 6144, 6144
      %30 = vsyncadd [#allocation6], %s29
      %s31 = sshll.u32 [#allocation5], 4
      %s32 = int_to_ptr.vmem [resolvable:$true] %s31
      %37 = dma.hbm_to_vmem [thread:$0]  %s1, 6144, %s32, [#allocation6], 128, 128, 8
    $region9: #{tpu_custom_call.1} parent=1 // pred_fallthru
      _
    // Predicated region
    $region10: #{tpu_custom_call.1} parent=1 // pred_check
      _
    $region11: #{tpu_custom_call.1} parent=1 // pred_check_branch
      %39 = sbr.rel (0) target = $region13
    $region12: #{tpu_custom_call.1} parent=1 // pred_region
      %s41 = ssub.s32 6144, 6144
      %42 = vsyncadd [#allocation6], %s41
      %s43 = sshll.u32 [#allocation7], 4
      %s44 = int_to_ptr.vmem [resolvable:$true] %s43
      %49 = dma.hbm_to_vmem [thread:$0]  %s2, 6144, %s44, [#allocation6], 128, 128, 8
    $region13: #{tpu_custom_call.1} parent=1 // pred_fallthru
      _
    // Predicated region
    $region14: #{tpu_custom_call.1} parent=1 // pred_check
      _
    $region15: #{tpu_custom_call.1} parent=1 // pred_check_branch
      %51 = sbr.rel (0) target = $region17
    $region16: #{tpu_custom_call.1} parent=1 // pred_region
      %s53 = ssub.s32 2048, 2048
      %54 = vsyncadd [#allocation9], %s53
      %s55 = sshll.u32 [#allocation8], 4
      %s56 = int_to_ptr.vmem [resolvable:$true] %s55
      %61 = dma.hbm_to_vmem [thread:$0]  %s3, 2048, %s56, [#allocation9], 128, 128, 8
    $region17: #{tpu_custom_call.1} parent=1 // pred_fallthru
      _
    // Predicated region
    $region18: #{tpu_custom_call.1} parent=1 // pred_check
      _
    $region19: #{tpu_custom_call.1} parent=1 // pred_check_branch
      %63 = sbr.rel (0) target = $region21
    $region20: #{tpu_custom_call.1} parent=1 // pred_region
      _
    $region21: #{tpu_custom_call.1} parent=1 // pred_fallthru
      _
    // Predicated region
    $region22: #{tpu_custom_call.1} parent=1 // pred_check
      _
    $region23: #{tpu_custom_call.1} parent=1 // pred_check_branch
      %65 = sbr.rel (0) target = $region25
    $region24: #{tpu_custom_call.1} parent=1 // pred_region
      %66 = dma.done [#allocation3], 256
    $region25: #{tpu_custom_call.1} parent=1 // pred_fallthru
      _
    // Predicated region
    $region26: #{tpu_custom_call.1} parent=1 // pred_check
      _
    $region27: #{tpu_custom_call.1} parent=1 // pred_check_branch
      %68 = sbr.rel (0) target = $region29
    $region28: #{tpu_custom_call.1} parent=1 // pred_region
      %69 = dma.done [#allocation6], 6144
    $region29: #{tpu_custom_call.1} parent=1 // pred_fallthru
      _
    // Predicated region
    $region30: #{tpu_custom_call.1} parent=1 // pred_check
      _
    $region31: #{tpu_custom_call.1} parent=1 // pred_check_branch
      %71 = sbr.rel (0) target = $region33
    $region32: #{tpu_custom_call.1} parent=1 // pred_region
      %72 = dma.done [#allocation6], 6144
    $region33: #{tpu_custom_call.1} parent=1 // pred_fallthru
      _
    // Predicated region
    $region34: #{tpu_custom_call.1} parent=1 // pred_check
      _
    $region35: #{tpu_custom_call.1} parent=1 // pred_check_branch
      %74 = sbr.rel (0) target = $region37
    $region36: #{tpu_custom_call.1} parent=1 // pred_region
      %75 = dma.done [#allocation9], 2048
    $region37: #{tpu_custom_call.1} parent=1 // pred_fallthru
      _
    %v76 = vld [vmem:[#allocation2] sm:$0xff]
    %v77 = vld [vmem:[#allocation2 + $0x8] sm:$0xff]
    %v78 = vld [vmem:[#allocation8] sm:$0xff]
    %v79 = vld [vmem:[#allocation8 + $0x8] sm:$0xff]
    %v80 = vld [vmem:[#allocation8 + $0x10] sm:$0xff]
    %v81 = vld [vmem:[#allocation8 + $0x18] sm:$0xff]
    %v82 = vld [vmem:[#allocation8 + $0x20] sm:$0xff]
    %v83 = vld [vmem:[#allocation8 + $0x28] sm:$0xff]
    %v84 = vld [vmem:[#allocation8 + $0x30] sm:$0xff]
    %v85 = vld [vmem:[#allocation8 + $0x38] sm:$0xff]
    %v86 = vld [vmem:[#allocation8 + $0x40] sm:$0xff]
    %v87 = vld [vmem:[#allocation8 + $0x48] sm:$0xff]
    %v88 = vld [vmem:[#allocation8 + $0x50] sm:$0xff]
    %v89 = vld [vmem:[#allocation8 + $0x58] sm:$0xff]
    %v90 = vld [vmem:[#allocation8 + $0x60] sm:$0xff]
    %v91 = vld [vmem:[#allocation8 + $0x68] sm:$0xff]
    %v92 = vld [vmem:[#allocation8 + $0x70] sm:$0xff]
    %v93 = vld [vmem:[#allocation8 + $0x78] sm:$0xff]
    %v94 = vlaneseq
    %v95 = vshrl.u32 %v94, 7
    %v96 = vadd.s32 %v95, 8
    %vm97 = vcmp.eq.s32.totalorder %v95, 0
    %vm98 = vcmp.eq.s32.totalorder %v96, 0
    %vm99 = vcmp.eq.s32.totalorder %v95, 15
    %vm100 = vcmp.eq.s32.totalorder %v96, 15
    %v101 = vld [vmem:[%s4] sm:$0x1]
    %v102 = vld [vmem:[%s4 + $0x1] sm:$0x1]
    %v103 = vld [vmem:[%s4 + $0x2] sm:$0x1]
    %v104 = vld [vmem:[%s4 + $0x3] sm:$0x1]
    %v105 = vrot.slane %v76, 7
    %v106 = vrot.slane %v77, 7
    %vm107 = vcmp.lt.s32.totalorder %v95, 1
    %v108 = vsel %vm107, %v105, %v106
    %v109 = vsel %vm107, %v106, %v105
    %v110 = vsel %vm97, 1, 0
    %v111 = vsel %vm98, 1, 0
    %vm112 = vcmp.eq.s32.totalorder %v110, 1
    %vm113 = vcmp.eq.s32.totalorder %v111, 1
    %v114 = vsel %vm112, 0.0, %v109
    %v115 = vsel %vm113, 0.0, %v108
    %v116 = vrot.slane %v76, 1
    %v117 = vrot.slane %v77, 1
    %vm118 = vcmp.lt.s32.totalorder %v95, 7
    %v119 = vsel %vm118, %v116, %v117
    %v120 = vsel %vm118, %v117, %v116
    %v121 = vsel %vm99, 1, 0
    %v122 = vsel %vm100, 1, 0
    %vm123 = vcmp.eq.s32.totalorder %v121, 1
    %vm124 = vcmp.eq.s32.totalorder %v122, 1
    %v125 = vsel %vm123, 0.0, %v119
    %v126 = vsel %vm124, 0.0, %v120
    %v127 = vld [vmem:[#allocation5] sm:$0xff]
    %v128 = vld [vmem:[#allocation5 + $0x8] sm:$0xff]
    %v129 = vld [vmem:[#allocation5 + $0x10] sm:$0xff]
    %v130 = vld [vmem:[#allocation5 + $0x18] sm:$0xff]
    %v131 = vld [vmem:[#allocation5 + $0x20] sm:$0xff]
    %v132 = vld [vmem:[#allocation5 + $0x28] sm:$0xff]
    %v133 = vld [vmem:[#allocation5 + $0x30] sm:$0xff]
    %v134 = vld [vmem:[#allocation5 + $0x38] sm:$0xff]
    %v135 = vld [vmem:[#allocation5 + $0x40] sm:$0xff]
    %v136 = vld [vmem:[#allocation5 + $0x48] sm:$0xff]
    %v137 = vld [vmem:[#allocation5 + $0x50] sm:$0xff]
    %v138 = vld [vmem:[#allocation5 + $0x58] sm:$0xff]
    %v139 = vld [vmem:[#allocation5 + $0x60] sm:$0xff]
    %v140 = vld [vmem:[#allocation5 + $0x68] sm:$0xff]
    %v141 = vld [vmem:[#allocation5 + $0x70] sm:$0xff]
    %v142 = vld [vmem:[#allocation5 + $0x78] sm:$0xff]
    %v143 = vld [vmem:[#allocation5 + $0x80] sm:$0xff]
    %v144 = vld [vmem:[#allocation5 + $0x88] sm:$0xff]
    %v145 = vld [vmem:[#allocation5 + $0x90] sm:$0xff]
    %v146 = vld [vmem:[#allocation5 + $0x98] sm:$0xff]
    %v147 = vld [vmem:[#allocation5 + $0xa0] sm:$0xff]
    %v148 = vld [vmem:[#allocation5 + $0xa8] sm:$0xff]
    %v149 = vld [vmem:[#allocation5 + $0xb0] sm:$0xff]
    %v150 = vld [vmem:[#allocation5 + $0xb8] sm:$0xff]
    %v151 = vld [vmem:[#allocation5 + $0xc0] sm:$0xff]
    %v152 = vld [vmem:[#allocation5 + $0xc8] sm:$0xff]
    %v153 = vld [vmem:[#allocation5 + $0xd0] sm:$0xff]
    %v154 = vld [vmem:[#allocation5 + $0xd8] sm:$0xff]
    %v155 = vld [vmem:[#allocation5 + $0xe0] sm:$0xff]
    %v156 = vld [vmem:[#allocation5 + $0xe8] sm:$0xff]
    %v157 = vld [vmem:[#allocation5 + $0xf0] sm:$0xff]
    %v158 = vld [vmem:[#allocation5 + $0xf8] sm:$0xff]
    %v159 = vld [vmem:[#allocation5 + $0x100] sm:$0xff]
    %v160 = vld [vmem:[#allocation5 + $0x108] sm:$0xff]
    %v161 = vld [vmem:[#allocation5 + $0x110] sm:$0xff]
    %v162 = vld [vmem:[#allocation5 + $0x118] sm:$0xff]
    %v163 = vld [vmem:[#allocation5 + $0x120] sm:$0xff]
    %v164 = vld [vmem:[#allocation5 + $0x128] sm:$0xff]
    %v165 = vld [vmem:[#allocation5 + $0x130] sm:$0xff]
    %v166 = vld [vmem:[#allocation5 + $0x138] sm:$0xff]
    %v167 = vld [vmem:[#allocation5 + $0x140] sm:$0xff]
    %v168 = vld [vmem:[#allocation5 + $0x148] sm:$0xff]
    %v169 = vld [vmem:[#allocation5 + $0x150] sm:$0xff]
    %v170 = vld [vmem:[#allocation5 + $0x158] sm:$0xff]
    %v171 = vld [vmem:[#allocation5 + $0x160] sm:$0xff]
    %v172 = vld [vmem:[#allocation5 + $0x168] sm:$0xff]
    %v173 = vld [vmem:[#allocation5 + $0x170] sm:$0xff]
    %v174 = vld [vmem:[#allocation5 + $0x178] sm:$0xff]
    %175 = vmatprep.subr.mxu0 0.0
    %176 = vmatpush1.msra.mxu0 %v142
    %177 = vmatprep.subr.mxu0 0.0
    %178 = vmatpush1.msra.mxu0 %v141
    %179 = vmatprep.subr.mxu0 0.0
    %180 = vmatpush1.msra.mxu0 %v140
    %181 = vmatprep.subr.mxu0 0.0
    %182 = vmatpush1.msra.mxu0 %v139
    %183 = vmatprep.subr.mxu0 0.0
    %184 = vmatpush1.msra.mxu0 %v138
    %185 = vmatprep.subr.mxu0 0.0
    %186 = vmatpush1.msra.mxu0 %v137
    %187 = vmatprep.subr.mxu0 0.0
    %188 = vmatpush1.msra.mxu0 %v136
    %189 = vmatprep.subr.mxu0 0.0
    %190 = vmatpush1.msra.mxu0 %v135
    %191 = vmatprep.subr.mxu0 0.0
    %192 = vmatpush1.msra.mxu0 %v134
    %193 = vmatprep.subr.mxu0 0.0
    %194 = vmatpush1.msra.mxu0 %v133
    %195 = vmatprep.subr.mxu0 0.0
    %196 = vmatpush1.msra.mxu0 %v132
    %197 = vmatprep.subr.mxu0 0.0
    %198 = vmatpush1.msra.mxu0 %v131
    %199 = vmatprep.subr.mxu0 0.0
    %200 = vmatpush1.msra.mxu0 %v130
    %201 = vmatprep.subr.mxu0 0.0
    %202 = vmatpush1.msra.mxu0 %v129
    %203 = vmatprep.subr.mxu0 0.0
    %204 = vmatpush1.msra.mxu0 %v128
    %205 = vmatprep.subr.mxu0 0.0
    %206 = vmatpush1.msra.mxu0 %v127
    %207 = vmatprep.subr.mxu0 0.0
    %208 = vmatpush2.msra.mxu0 %v158
    %209 = vmatprep.subr.mxu0 0.0
    %210 = vmatpush2.msra.mxu0 %v157
    %211 = vmatprep.subr.mxu0 0.0
    %212 = vmatpush2.msra.mxu0 %v156
    %213 = vmatprep.subr.mxu0 0.0
    %214 = vmatpush2.msra.mxu0 %v155
    %215 = vmatprep.subr.mxu0 0.0
    %216 = vmatpush2.msra.mxu0 %v154
    %217 = vmatprep.subr.mxu0 0.0
    %218 = vmatpush2.msra.mxu0 %v153
    %219 = vmatprep.subr.mxu0 0.0
    %220 = vmatpush2.msra.mxu0 %v152
    %221 = vmatprep.subr.mxu0 0.0
    %222 = vmatpush2.msra.mxu0 %v151
    %223 = vmatprep.subr.mxu0 0.0
    %224 = vmatpush2.msra.mxu0 %v150
    %225 = vmatprep.subr.mxu0 0.0
    %226 = vmatpush2.msra.mxu0 %v149
    %227 = vmatprep.subr.mxu0 0.0
    %228 = vmatpush2.msra.mxu0 %v148
    %229 = vmatprep.subr.mxu0 0.0
    %230 = vmatpush2.msra.mxu0 %v147
    %231 = vmatprep.subr.mxu0 0.0
    %232 = vmatpush2.msra.mxu0 %v146
    %233 = vmatprep.subr.mxu0 0.0
    %234 = vmatpush2.msra.mxu0 %v145
    %235 = vmatprep.subr.mxu0 0.0
    %236 = vmatpush2.msra.mxu0 %v144
    %237 = vmatprep.subr.mxu0 0.0
    %238 = vmatpush2.msra.mxu0 %v143
    %239 = vmatprep.mubr.f32.mxu0 %v76
    %240 = vmatmul.mubr.f32.gmra.mxu0 %v114
    %v241 = vpop.f32.mrf.mxu0
    %v242 = vadd.f32 0.0, %v241
    %v243 = vpop.f32.mrf.mxu0
    %244 = vmatprep.mubr.f32.mxu0 %v77
    %245 = vmatmul.mubr.f32.gmra.mxu0 %v115
    %v246 = vpop.f32.mrf.mxu0
    %v247 = vadd.f32 0.0, %v246
    %v248 = vpop.f32.mrf.mxu0
    %249 = vdwg.mxu0
    %250 = vmatprep.subr.mxu0 0.0
    %251 = vmatpush1.msra.mxu0 %v174
    %252 = vmatprep.subr.mxu0 0.0
    %253 = vmatpush1.msra.mxu0 %v173
    %254 = vmatprep.subr.mxu0 0.0
    %255 = vmatpush1.msra.mxu0 %v172
    %256 = vmatprep.subr.mxu0 0.0
    %257 = vmatpush1.msra.mxu0 %v171
    %258 = vmatprep.subr.mxu0 0.0
    %259 = vmatpush1.msra.mxu0 %v170
    %260 = vmatprep.subr.mxu0 0.0
    %261 = vmatpush1.msra.mxu0 %v169
    %262 = vmatprep.subr.mxu0 0.0
    %263 = vmatpush1.msra.mxu0 %v168
    %264 = vmatprep.subr.mxu0 0.0
    %265 = vmatpush1.msra.mxu0 %v167
    %266 = vmatprep.subr.mxu0 0.0
    %267 = vmatpush1.msra.mxu0 %v166
    %268 = vmatprep.subr.mxu0 0.0
    %269 = vmatpush1.msra.mxu0 %v165
    %270 = vmatprep.subr.mxu0 0.0
    %271 = vmatpush1.msra.mxu0 %v164
    %272 = vmatprep.subr.mxu0 0.0
    %273 = vmatpush1.msra.mxu0 %v163
    %274 = vmatprep.subr.mxu0 0.0
    %275 = vmatpush1.msra.mxu0 %v162
    %276 = vmatprep.subr.mxu0 0.0
    %277 = vmatpush1.msra.mxu0 %v161
    %278 = vmatprep.subr.mxu0 0.0
    %279 = vmatpush1.msra.mxu0 %v160
    %280 = vmatprep.subr.mxu0 0.0
    %281 = vmatpush1.msra.mxu0 %v159
    %282 = vmatprep.subr.mxu0 0.0
    %283 = vmatpush2.msra.mxu0 0.0
    %284 = vmatprep.subr.mxu0 0.0
    %285 = vmatpush2.msra.mxu0 0.0
    %286 = vmatprep.subr.mxu0 0.0
    %287 = vmatpush2.msra.mxu0 0.0
    %288 = vmatprep.subr.mxu0 0.0
    %289 = vmatpush2.msra.mxu0 0.0
    %290 = vmatprep.subr.mxu0 0.0
    %291 = vmatpush2.msra.mxu0 0.0
    %292 = vmatprep.subr.mxu0 0.0
    %293 = vmatpush2.msra.mxu0 0.0
    %294 = vmatprep.subr.mxu0 0.0
    %295 = vmatpush2.msra.mxu0 0.0
    %296 = vmatprep.subr.mxu0 0.0
    %297 = vmatpush2.msra.mxu0 0.0
    %298 = vmatprep.subr.mxu0 0.0
    %299 = vmatpush2.msra.mxu0 0.0
    %300 = vmatprep.subr.mxu0 0.0
    %301 = vmatpush2.msra.mxu0 0.0
    %302 = vmatprep.subr.mxu0 0.0
    %303 = vmatpush2.msra.mxu0 0.0
    %304 = vmatprep.subr.mxu0 0.0
    %305 = vmatpush2.msra.mxu0 0.0
    %306 = vmatprep.subr.mxu0 0.0
    %307 = vmatpush2.msra.mxu0 0.0
    %308 = vmatprep.subr.mxu0 0.0
    %309 = vmatpush2.msra.mxu0 0.0
    %310 = vmatprep.subr.mxu0 0.0
    %311 = vmatpush2.msra.mxu0 0.0
    %312 = vmatprep.subr.mxu0 0.0
    %313 = vmatpush2.msra.mxu0 0.0
    %314 = vmatprep.mubr.f32.mxu0 0.0
    %315 = vmatmul.mubr.f32.gmra.mxu0 %v125
    %v316 = vpop.f32.mrf.mxu0
    %v317 = vadd.f32 %v242, %v316
    %v318 = vpop.f32.mrf.mxu0
    %319 = vmatprep.mubr.f32.mxu0 0.0
    %320 = vmatmul.mubr.f32.gmra.mxu0 %v126
    %v321 = vpop.f32.mrf.mxu0
    %v322 = vadd.f32 %v247, %v321
    %v323 = vpop.f32.mrf.mxu0
    %324 = vdwg.mxu0
    %v325 = vadd.f32 %v317, %v322
    %v326 = vrot.slane %v325, 4
    %v327 = vadd.f32 %v325, %v326
    %v328 = vrot.slane %v327, 2
    %v329 = vadd.f32 %v327, %v328
    %v330 = vrot.slane %v329, 1
    %v331 = vadd.f32 %v329, %v330
    %v332 = vmul.f32 %v317, %v317
    %v333 = vmul.f32 %v322, %v322
    %v334 = vadd.f32 %v332, %v333
    %v335 = vrot.slane %v334, 4
    %v336 = vadd.f32 %v334, %v335
    %v337 = vrot.slane %v336, 2
    %v338 = vadd.f32 %v336, %v337
    %v339 = vrot.slane %v338, 1
    %v340 = vadd.f32 %v338, %v339
    %vm341 = vcmask 1040384
    %v342 = vsel %vm341, %v331, %v340
    %343 = vmatprep.subr.mxu0 0.0
    %344 = vmatpush1.msra.mxu0 %v93
    %345 = vmatprep.subr.mxu0 0.0
    %346 = vmatpush1.msra.mxu0 %v92
    %347 = vmatprep.subr.mxu0 0.0
    %348 = vmatpush1.msra.mxu0 %v91
    %349 = vmatprep.subr.mxu0 0.0
    %350 = vmatpush1.msra.mxu0 %v90
    %351 = vmatprep.subr.mxu0 0.0
    %352 = vmatpush1.msra.mxu0 %v89
    %353 = vmatprep.subr.mxu0 0.0
    %354 = vmatpush1.msra.mxu0 %v88
    %355 = vmatprep.subr.mxu0 0.0
    %356 = vmatpush1.msra.mxu0 %v87
    %357 = vmatprep.subr.mxu0 0.0
    %358 = vmatpush1.msra.mxu0 %v86
    %359 = vmatprep.subr.mxu0 0.0
    %360 = vmatpush1.msra.mxu0 %v85
    %361 = vmatprep.subr.mxu0 0.0
    %362 = vmatpush1.msra.mxu0 %v84
    %363 = vmatprep.subr.mxu0 0.0
    %364 = vmatpush1.msra.mxu0 %v83
    %365 = vmatprep.subr.mxu0 0.0
    %366 = vmatpush1.msra.mxu0 %v82
    %367 = vmatprep.subr.mxu0 0.0
    %368 = vmatpush1.msra.mxu0 %v81
    %369 = vmatprep.subr.mxu0 0.0
    %370 = vmatpush1.msra.mxu0 %v80
    %371 = vmatprep.subr.mxu0 0.0
    %372 = vmatpush1.msra.mxu0 %v79
    %373 = vmatprep.subr.mxu0 0.0
    %374 = vmatpush1.msra.mxu0 %v78
    %375 = vmatprep.subr.mxu0 0.0
    %376 = vmatpush2.msra.mxu0 0.0
    %377 = vmatprep.subr.mxu0 0.0
    %378 = vmatpush2.msra.mxu0 0.0
    %379 = vmatprep.subr.mxu0 0.0
    %380 = vmatpush2.msra.mxu0 0.0
    %381 = vmatprep.subr.mxu0 0.0
    %382 = vmatpush2.msra.mxu0 0.0
    %383 = vmatprep.subr.mxu0 0.0
    %384 = vmatpush2.msra.mxu0 0.0
    %385 = vmatprep.subr.mxu0 0.0
    %386 = vmatpush2.msra.mxu0 0.0
    %387 = vmatprep.subr.mxu0 0.0
    %388 = vmatpush2.msra.mxu0 0.0
    %389 = vmatprep.subr.mxu0 0.0
    %390 = vmatpush2.msra.mxu0 0.0
    %391 = vmatprep.subr.mxu0 0.0
    %392 = vmatpush2.msra.mxu0 0.0
    %393 = vmatprep.subr.mxu0 0.0
    %394 = vmatpush2.msra.mxu0 0.0
    %395 = vmatprep.subr.mxu0 0.0
    %396 = vmatpush2.msra.mxu0 0.0
    %397 = vmatprep.subr.mxu0 0.0
    %398 = vmatpush2.msra.mxu0 0.0
    %399 = vmatprep.subr.mxu0 0.0
    %400 = vmatpush2.msra.mxu0 0.0
    %401 = vmatprep.subr.mxu0 0.0
    %402 = vmatpush2.msra.mxu0 0.0
    %403 = vmatprep.subr.mxu0 0.0
    %404 = vmatpush2.msra.mxu0 0.0
    %405 = vmatprep.subr.mxu0 0.0
    %406 = vmatpush2.msra.mxu0 0.0
    %407 = vmatprep.mubr.f32.mxu0 0.0
    %408 = vmatmul.mubr.f32.gmra.mxu0 %v342
    %v409 = vpop.f32.mrf.mxu0
    %v410 = vadd.f32 0.0, %v409
    %v411 = vpop.f32.mrf.mxu0
    %412 = vdwg.mxu0
    %v413 = vmul.f32 %v410, 0.001953125
    %v414 = vmul.f32 %v413, %v413
    %v416 = vrot.slane %v414, 7
    %v418 = vsub.f32 %v413, %v416
    %v419 = vadd.f32 %v418, 1e-05
    %v420 = vrsqrt.pop %v419
    %v422 = vrot.slane %v420, 1
    %v424 = vmul.f32 %v101, %v422
    %v425 = vmul.f32 %v413, %v424
    %v426 = vsub.f32 %v102, %v425
    %v427 = vlaneseq
    %v428 = vshrl.u32 %v427, 7
    %v429 = vsub.s32 0, %v428
    %v430 = vrot.slane %v424, %v429
    %v431 = vmul.f32 %v317, %v430
    %v432 = vmul.f32 %v322, %v430
    %v433 = vlaneseq
    %v434 = vshrl.u32 %v433, 7
    %v435 = vsub.s32 0, %v434
    %v436 = vrot.slane %v426, %v435
    %v437 = vadd.f32 %v431, %v436
    %v438 = vadd.f32 %v432, %v436
    %v439 = vmax.f32 %v437, 0.0
    %v440 = vmax.f32 %v438, 0.0
    %v441 = vrot.slane %v439, 7
    %v442 = vrot.slane %v440, 7
    %v443 = vsel %vm107, %v441, %v442
    %v444 = vsel %vm107, %v442, %v441
    %v445 = vsel %vm112, 0.0, %v444
    %v446 = vsel %vm113, 0.0, %v443
    %v447 = vrot.slane %v439, 1
    %v448 = vrot.slane %v440, 1
    %v449 = vsel %vm118, %v447, %v448
    %v450 = vsel %vm118, %v448, %v447
    %v451 = vsel %vm123, 0.0, %v449
    %v452 = vsel %vm124, 0.0, %v450
    %v453 = vld [vmem:[#allocation7] sm:$0xff]
    %v454 = vld [vmem:[#allocation7 + $0x8] sm:$0xff]
    %v455 = vld [vmem:[#allocation7 + $0x10] sm:$0xff]
    %v456 = vld [vmem:[#allocation7 + $0x18] sm:$0xff]
    %v457 = vld [vmem:[#allocation7 + $0x20] sm:$0xff]
    %v458 = vld [vmem:[#allocation7 + $0x28] sm:$0xff]
    %v459 = vld [vmem:[#allocation7 + $0x30] sm:$0xff]
    %v460 = vld [vmem:[#allocation7 + $0x38] sm:$0xff]
    %v461 = vld [vmem:[#allocation7 + $0x40] sm:$0xff]
    %v462 = vld [vmem:[#allocation7 + $0x48] sm:$0xff]
    %v463 = vld [vmem:[#allocation7 + $0x50] sm:$0xff]
    %v464 = vld [vmem:[#allocation7 + $0x58] sm:$0xff]
    %v465 = vld [vmem:[#allocation7 + $0x60] sm:$0xff]
    %v466 = vld [vmem:[#allocation7 + $0x68] sm:$0xff]
    %v467 = vld [vmem:[#allocation7 + $0x70] sm:$0xff]
    %v468 = vld [vmem:[#allocation7 + $0x78] sm:$0xff]
    %v469 = vld [vmem:[#allocation7 + $0x80] sm:$0xff]
    %v470 = vld [vmem:[#allocation7 + $0x88] sm:$0xff]
    %v471 = vld [vmem:[#allocation7 + $0x90] sm:$0xff]
    %v472 = vld [vmem:[#allocation7 + $0x98] sm:$0xff]
    %v473 = vld [vmem:[#allocation7 + $0xa0] sm:$0xff]
    %v474 = vld [vmem:[#allocation7 + $0xa8] sm:$0xff]
    %v475 = vld [vmem:[#allocation7 + $0xb0] sm:$0xff]
    %v476 = vld [vmem:[#allocation7 + $0xb8] sm:$0xff]
    %v477 = vld [vmem:[#allocation7 + $0xc0] sm:$0xff]
    %v478 = vld [vmem:[#allocation7 + $0xc8] sm:$0xff]
    %v479 = vld [vmem:[#allocation7 + $0xd0] sm:$0xff]
    %v480 = vld [vmem:[#allocation7 + $0xd8] sm:$0xff]
    %v481 = vld [vmem:[#allocation7 + $0xe0] sm:$0xff]
    %v482 = vld [vmem:[#allocation7 + $0xe8] sm:$0xff]
    %v483 = vld [vmem:[#allocation7 + $0xf0] sm:$0xff]
    %v484 = vld [vmem:[#allocation7 + $0xf8] sm:$0xff]
    %v485 = vld [vmem:[#allocation7 + $0x100] sm:$0xff]
    %v486 = vld [vmem:[#allocation7 + $0x108] sm:$0xff]
    %v487 = vld [vmem:[#allocation7 + $0x110] sm:$0xff]
    %v488 = vld [vmem:[#allocation7 + $0x118] sm:$0xff]
    %v489 = vld [vmem:[#allocation7 + $0x120] sm:$0xff]
    %v490 = vld [vmem:[#allocation7 + $0x128] sm:$0xff]
    %v491 = vld [vmem:[#allocation7 + $0x130] sm:$0xff]
    %v492 = vld [vmem:[#allocation7 + $0x138] sm:$0xff]
    %v493 = vld [vmem:[#allocation7 + $0x140] sm:$0xff]
    %v494 = vld [vmem:[#allocation7 + $0x148] sm:$0xff]
    %v495 = vld [vmem:[#allocation7 + $0x150] sm:$0xff]
    %v496 = vld [vmem:[#allocation7 + $0x158] sm:$0xff]
    %v497 = vld [vmem:[#allocation7 + $0x160] sm:$0xff]
    %v498 = vld [vmem:[#allocation7 + $0x168] sm:$0xff]
    %v499 = vld [vmem:[#allocation7 + $0x170] sm:$0xff]
    %v500 = vld [vmem:[#allocation7 + $0x178] sm:$0xff]
    %501 = vmatprep.subr.mxu0 0.0
    %502 = vmatpush1.msra.mxu0 %v468
    %503 = vmatprep.subr.mxu0 0.0
    %504 = vmatpush1.msra.mxu0 %v467
    %505 = vmatprep.subr.mxu0 0.0
    %506 = vmatpush1.msra.mxu0 %v466
    %507 = vmatprep.subr.mxu0 0.0
    %508 = vmatpush1.msra.mxu0 %v465
    %509 = vmatprep.subr.mxu0 0.0
    %510 = vmatpush1.msra.mxu0 %v464
    %511 = vmatprep.subr.mxu0 0.0
    %512 = vmatpush1.msra.mxu0 %v463
    %513 = vmatprep.subr.mxu0 0.0
    %514 = vmatpush1.msra.mxu0 %v462
    %515 = vmatprep.subr.mxu0 0.0
    %516 = vmatpush1.msra.mxu0 %v461
    %517 = vmatprep.subr.mxu0 0.0
    %518 = vmatpush1.msra.mxu0 %v460
    %519 = vmatprep.subr.mxu0 0.0
    %520 = vmatpush1.msra.mxu0 %v459
    %521 = vmatprep.subr.mxu0 0.0
    %522 = vmatpush1.msra.mxu0 %v458
    %523 = vmatprep.subr.mxu0 0.0
    %524 = vmatpush1.msra.mxu0 %v457
    %525 = vmatprep.subr.mxu0 0.0
    %526 = vmatpush1.msra.mxu0 %v456
    %527 = vmatprep.subr.mxu0 0.0
    %528 = vmatpush1.msra.mxu0 %v455
    %529 = vmatprep.subr.mxu0 0.0
    %530 = vmatpush1.msra.mxu0 %v454
    %531 = vmatprep.subr.mxu0 0.0
    %532 = vmatpush1.msra.mxu0 %v453
    %533 = vmatprep.subr.mxu0 0.0
    %534 = vmatpush2.msra.mxu0 %v484
    %535 = vmatprep.subr.mxu0 0.0
    %536 = vmatpush2.msra.mxu0 %v483
    %537 = vmatprep.subr.mxu0 0.0
    %538 = vmatpush2.msra.mxu0 %v482
    %539 = vmatprep.subr.mxu0 0.0
    %540 = vmatpush2.msra.mxu0 %v481
    %541 = vmatprep.subr.mxu0 0.0
    %542 = vmatpush2.msra.mxu0 %v480
    %543 = vmatprep.subr.mxu0 0.0
    %544 = vmatpush2.msra.mxu0 %v479
    %545 = vmatprep.subr.mxu0 0.0
    %546 = vmatpush2.msra.mxu0 %v478
    %547 = vmatprep.subr.mxu0 0.0
    %548 = vmatpush2.msra.mxu0 %v477
    %549 = vmatprep.subr.mxu0 0.0
    %550 = vmatpush2.msra.mxu0 %v476
    %551 = vmatprep.subr.mxu0 0.0
    %552 = vmatpush2.msra.mxu0 %v475
    %553 = vmatprep.subr.mxu0 0.0
    %554 = vmatpush2.msra.mxu0 %v474
    %555 = vmatprep.subr.mxu0 0.0
    %556 = vmatpush2.msra.mxu0 %v473
    %557 = vmatprep.subr.mxu0 0.0
    %558 = vmatpush2.msra.mxu0 %v472
    %559 = vmatprep.subr.mxu0 0.0
    %560 = vmatpush2.msra.mxu0 %v471
    %561 = vmatprep.subr.mxu0 0.0
    %562 = vmatpush2.msra.mxu0 %v470
    %563 = vmatprep.subr.mxu0 0.0
    %564 = vmatpush2.msra.mxu0 %v469
    %565 = vmatprep.mubr.f32.mxu0 %v439
    %566 = vmatmul.mubr.f32.gmra.mxu0 %v445
    %v567 = vpop.f32.mrf.mxu0
    %v568 = vadd.f32 0.0, %v567
    %v569 = vpop.f32.mrf.mxu0
    %570 = vmatprep.mubr.f32.mxu0 %v440
    %571 = vmatmul.mubr.f32.gmra.mxu0 %v446
    %v572 = vpop.f32.mrf.mxu0
    %v573 = vadd.f32 0.0, %v572
    %v574 = vpop.f32.mrf.mxu0
    %575 = vdwg.mxu0
    %576 = vmatprep.subr.mxu0 0.0
    %577 = vmatpush1.msra.mxu0 %v500
    %578 = vmatprep.subr.mxu0 0.0
    %579 = vmatpush1.msra.mxu0 %v499
    %580 = vmatprep.subr.mxu0 0.0
    %581 = vmatpush1.msra.mxu0 %v498
    %582 = vmatprep.subr.mxu0 0.0
    %583 = vmatpush1.msra.mxu0 %v497
    %584 = vmatprep.subr.mxu0 0.0
    %585 = vmatpush1.msra.mxu0 %v496
    %586 = vmatprep.subr.mxu0 0.0
    %587 = vmatpush1.msra.mxu0 %v495
    %588 = vmatprep.subr.mxu0 0.0
    %589 = vmatpush1.msra.mxu0 %v494
    %590 = vmatprep.subr.mxu0 0.0
    %591 = vmatpush1.msra.mxu0 %v493
    %592 = vmatprep.subr.mxu0 0.0
    %593 = vmatpush1.msra.mxu0 %v492
    %594 = vmatprep.subr.mxu0 0.0
    %595 = vmatpush1.msra.mxu0 %v491
    %596 = vmatprep.subr.mxu0 0.0
    %597 = vmatpush1.msra.mxu0 %v490
    %598 = vmatprep.subr.mxu0 0.0
    %599 = vmatpush1.msra.mxu0 %v489
    %600 = vmatprep.subr.mxu0 0.0
    %601 = vmatpush1.msra.mxu0 %v488
    %602 = vmatprep.subr.mxu0 0.0
    %603 = vmatpush1.msra.mxu0 %v487
    %604 = vmatprep.subr.mxu0 0.0
    %605 = vmatpush1.msra.mxu0 %v486
    %606 = vmatprep.subr.mxu0 0.0
    %607 = vmatpush1.msra.mxu0 %v485
    %608 = vmatprep.subr.mxu0 0.0
    %609 = vmatpush2.msra.mxu0 0.0
    %610 = vmatprep.subr.mxu0 0.0
    %611 = vmatpush2.msra.mxu0 0.0
    %612 = vmatprep.subr.mxu0 0.0
    %613 = vmatpush2.msra.mxu0 0.0
    %614 = vmatprep.subr.mxu0 0.0
    %615 = vmatpush2.msra.mxu0 0.0
    %616 = vmatprep.subr.mxu0 0.0
    %617 = vmatpush2.msra.mxu0 0.0
    %618 = vmatprep.subr.mxu0 0.0
    %619 = vmatpush2.msra.mxu0 0.0
    %620 = vmatprep.subr.mxu0 0.0
    %621 = vmatpush2.msra.mxu0 0.0
    %622 = vmatprep.subr.mxu0 0.0
    %623 = vmatpush2.msra.mxu0 0.0
    %624 = vmatprep.subr.mxu0 0.0
    %625 = vmatpush2.msra.mxu0 0.0
    %626 = vmatprep.subr.mxu0 0.0
    %627 = vmatpush2.msra.mxu0 0.0
    %628 = vmatprep.subr.mxu0 0.0
    %629 = vmatpush2.msra.mxu0 0.0
    %630 = vmatprep.subr.mxu0 0.0
    %631 = vmatpush2.msra.mxu0 0.0
    %632 = vmatprep.subr.mxu0 0.0
    %633 = vmatpush2.msra.mxu0 0.0
    %634 = vmatprep.subr.mxu0 0.0
    %635 = vmatpush2.msra.mxu0 0.0
    %636 = vmatprep.subr.mxu0 0.0
    %637 = vmatpush2.msra.mxu0 0.0
    %638 = vmatprep.subr.mxu0 0.0
    %639 = vmatpush2.msra.mxu0 0.0
    %640 = vmatprep.mubr.f32.mxu0 0.0
    %641 = vmatmul.mubr.f32.gmra.mxu0 %v451
    %v642 = vpop.f32.mrf.mxu0
    %v643 = vadd.f32 %v568, %v642
    %v644 = vpop.f32.mrf.mxu0
    %645 = vmatprep.mubr.f32.mxu0 0.0
    %646 = vmatmul.mubr.f32.gmra.mxu0 %v452
    %v647 = vpop.f32.mrf.mxu0
    %v648 = vadd.f32 %v573, %v647
    %v649 = vpop.f32.mrf.mxu0
    %650 = vdwg.mxu0
    %v651 = vadd.f32 %v643, %v648
    %v652 = vrot.slane %v651, 4
    %v653 = vadd.f32 %v651, %v652
    %v654 = vrot.slane %v653, 2
    %v655 = vadd.f32 %v653, %v654
    %v656 = vrot.slane %v655, 1
    %v657 = vadd.f32 %v655, %v656
    %v658 = vmul.f32 %v643, %v643
    %v659 = vmul.f32 %v648, %v648
    %v660 = vadd.f32 %v658, %v659
    %v661 = vrot.slane %v660, 4
    %v662 = vadd.f32 %v660, %v661
    %v663 = vrot.slane %v662, 2
    %v664 = vadd.f32 %v662, %v663
    %v665 = vrot.slane %v664, 1
    %v666 = vadd.f32 %v664, %v665
    %v667 = vsel %vm341, %v657, %v666
    %668 = vmatprep.subr.mxu0 0.0
    %669 = vmatpush1.msra.mxu0 %v93
    %670 = vmatprep.subr.mxu0 0.0
    %671 = vmatpush1.msra.mxu0 %v92
    %672 = vmatprep.subr.mxu0 0.0
    %673 = vmatpush1.msra.mxu0 %v91
    %674 = vmatprep.subr.mxu0 0.0
    %675 = vmatpush1.msra.mxu0 %v90
    %676 = vmatprep.subr.mxu0 0.0
    %677 = vmatpush1.msra.mxu0 %v89
    %678 = vmatprep.subr.mxu0 0.0
    %679 = vmatpush1.msra.mxu0 %v88
    %680 = vmatprep.subr.mxu0 0.0
    %681 = vmatpush1.msra.mxu0 %v87
    %682 = vmatprep.subr.mxu0 0.0
    %683 = vmatpush1.msra.mxu0 %v86
    %684 = vmatprep.subr.mxu0 0.0
    %685 = vmatpush1.msra.mxu0 %v85
    %686 = vmatprep.subr.mxu0 0.0
    %687 = vmatpush1.msra.mxu0 %v84
    %688 = vmatprep.subr.mxu0 0.0
    %689 = vmatpush1.msra.mxu0 %v83
    %690 = vmatprep.subr.mxu0 0.0
    %691 = vmatpush1.msra.mxu0 %v82
    %692 = vmatprep.subr.mxu0 0.0
    %693 = vmatpush1.msra.mxu0 %v81
    %694 = vmatprep.subr.mxu0 0.0
    %695 = vmatpush1.msra.mxu0 %v80
    %696 = vmatprep.subr.mxu0 0.0
    %697 = vmatpush1.msra.mxu0 %v79
    %698 = vmatprep.subr.mxu0 0.0
    %699 = vmatpush1.msra.mxu0 %v78
    %700 = vmatprep.subr.mxu0 0.0
    %701 = vmatpush2.msra.mxu0 0.0
    %702 = vmatprep.subr.mxu0 0.0
    %703 = vmatpush2.msra.mxu0 0.0
    %704 = vmatprep.subr.mxu0 0.0
    %705 = vmatpush2.msra.mxu0 0.0
    %706 = vmatprep.subr.mxu0 0.0
    %707 = vmatpush2.msra.mxu0 0.0
    %708 = vmatprep.subr.mxu0 0.0
    %709 = vmatpush2.msra.mxu0 0.0
    %710 = vmatprep.subr.mxu0 0.0
    %711 = vmatpush2.msra.mxu0 0.0
    %712 = vmatprep.subr.mxu0 0.0
    %713 = vmatpush2.msra.mxu0 0.0
    %714 = vmatprep.subr.mxu0 0.0
    %715 = vmatpush2.msra.mxu0 0.0
    %716 = vmatprep.subr.mxu0 0.0
    %717 = vmatpush2.msra.mxu0 0.0
    %718 = vmatprep.subr.mxu0 0.0
    %719 = vmatpush2.msra.mxu0 0.0
    %720 = vmatprep.subr.mxu0 0.0
    %721 = vmatpush2.msra.mxu0 0.0
    %722 = vmatprep.subr.mxu0 0.0
    %723 = vmatpush2.msra.mxu0 0.0
    %724 = vmatprep.subr.mxu0 0.0
    %725 = vmatpush2.msra.mxu0 0.0
    %726 = vmatprep.subr.mxu0 0.0
    %727 = vmatpush2.msra.mxu0 0.0
    %728 = vmatprep.subr.mxu0 0.0
    %729 = vmatpush2.msra.mxu0 0.0
    %730 = vmatprep.subr.mxu0 0.0
    %731 = vmatpush2.msra.mxu0 0.0
    %732 = vmatprep.mubr.f32.mxu0 0.0
    %733 = vmatmul.mubr.f32.gmra.mxu0 %v667
    %v734 = vpop.f32.mrf.mxu0
    %v735 = vadd.f32 0.0, %v734
    %v736 = vpop.f32.mrf.mxu0
    %737 = vdwg.mxu0
    %v738 = vmul.f32 %v735, 0.001953125
    %v739 = vmul.f32 %v738, %v738
    %v741 = vrot.slane %v739, 7
    %v743 = vsub.f32 %v738, %v741
    %v744 = vadd.f32 %v743, 1e-05
    %v745 = vrsqrt.pop %v744
    %v747 = vrot.slane %v745, 1
    %v749 = vmul.f32 %v103, %v747
    %v750 = vmul.f32 %v738, %v749
    %v751 = vsub.f32 %v104, %v750
    %v752 = vlaneseq
    %v753 = vshrl.u32 %v752, 7
    %v754 = vsub.s32 0, %v753
    %v755 = vrot.slane %v749, %v754
    %v756 = vmul.f32 %v643, %v755
    %v757 = vmul.f32 %v648, %v755
    %v758 = vlaneseq
    %v759 = vshrl.u32 %v758, 7
    %v760 = vsub.s32 0, %v759
    %v761 = vrot.slane %v751, %v760
    %v762 = vadd.f32 %v756, %v761
    %v763 = vadd.f32 %v757, %v761
    %v764 = vxor.u32 %v762, 2147483648
    %v765 = vxor.u32 %v763, 2147483648
    %v766 = vmul.f32 %v764, 1.442695
    %v767 = vpow.pop %v766
    %v768 = vmul.f32 %v765, 1.442695
    %v769 = vpow.pop %v768
    %v770 = vadd.f32 %v767, 1.0
    %v771 = vadd.f32 %v769, 1.0
    %v772 = vrcp.pop %v770
    %v773 = vmul.f32 1.0, %v772
    %v774 = vrcp.pop %v771
    %v775 = vmul.f32 1.0, %v774
    %v776 = vmul.f32 %v76, %v773
    %v777 = vmul.f32 %v77, %v775
    %778 = vst [vmem:[#allocation10] sm:$0xff] %v776
    %779 = vst [vmem:[#allocation10 + $0x8] sm:$0xff] %v777
    // Predicated region
    $region38: #{tpu_custom_call.1} parent=1 // pred_check
      _
    $region39: #{tpu_custom_call.1} parent=1 // pred_check_branch
      %781 = sbr.rel (0) target = $region41
    $region40: #{tpu_custom_call.1} parent=1 // pred_region
      %s783 = ssub.s32 256, 256
      %784 = vsyncadd [#allocation4], %s783
      %s785 = sshll.u32 [#allocation10], 4
      %s786 = int_to_ptr.vmem [resolvable:$true] %s785
      %791 = dma.vmem_to_hbm [thread:$0]  %s786, 256, %s5, [#allocation4], 128, 128, 8
    $region41: #{tpu_custom_call.1} parent=1 // pred_fallthru
      _
    // Predicated region
    $region42: #{tpu_custom_call.1} parent=1 // pred_check
      _
    $region43: #{tpu_custom_call.1} parent=1 // pred_check_branch
      %793 = sbr.rel (0) target = $region45
    $region44: #{tpu_custom_call.1} parent=1 // pred_region
      %794 = dma.done [#allocation4], 256
    $region45: #{tpu_custom_call.1} parent=1 // pred_fallthru
      _
    %795 = vsyncpa [#allocation3], 1
    %796 = vsyncpa [#allocation6], 1
    %797 = vsyncpa [#allocation9], 1
    %798 = vsyncpa [#allocation4], 1

</llo_original>
